<compile_context>
chip_gen: v7x
topology: tpu7x:2x2x1
jax: 0.10.0
libtpu: 0.0.40
codegen_flags: <defaults>
</compile_context>

<pallas_src>
import functools

import jax
import jax.numpy as jnp
from jax.experimental import pallas as pl
from jax.experimental.pallas import tpu as pltpu


def _round_up(n, m):
    return ((n + m - 1) // m) * m


def _num_tensorcores():
    """Best-effort TensorCores-per-chip (v7x has 2; v5e/v6e have 1)."""
    try:
        kind = jax.devices()[0].device_kind.lower()
    except Exception:
        return 1
    return 2 if ("v7" in kind or "7x" in kind) else 1


def _pick_images_per_step(batch, hw, *, target_rows=4096, num_cores=1):
    """Images per grid step (TB).

    Constraints / preferences from the perf review:
      * TB divides batch.
      * Output blocks (TB, C) must be sublane-dense: TB % 8 == 0 or TB == batch.
      * Single-TC chips (v5e/v6e): fewest steps wins -> largest TB that fits.
      * v7x (2 TCs): prefer a step count that is a multiple of num_cores so the
        "parallel" grid axis splits evenly across TensorCores.
      * Aim for ~target_rows MXU rows (TB*hw) per step to amortize the
        ~0.35 us/step fixed overhead.
    """
    divisors = [d for d in range(1, batch + 1) if batch % d == 0]
    multi = [d for d in divisors
             if d < batch and d % 8 == 0 and d * hw <= target_rows]
    if num_cores >= 2:
        balanced = [d for d in multi if (batch // d) % num_cores == 0]
        if balanced:
            return max(balanced)
    if batch * hw <= target_rows or not multi:
        return batch          # single step: full-dim blocks, fewest steps
    return max(multi)


def timm_pallas(x_nchw, params, *, prefix="img"):
    """Equivalent of TIMM.forward({f'{prefix}_image': x}) for the synthetic backbone."""
    conv_w = params["conv_w"]   # (Cout, Cin, 3, 3)   PyTorch conv layout
    conv_b = params["conv_b"]   # (Cout,)
    head_w = params["head_w"]   # (NC, Cout)          PyTorch Linear layout
    head_b = params["head_b"]   # (NC,)

    B, Cin, H, W = x_nchw.shape
    Cout = conv_w.shape[0]
    NC = head_w.shape[0]
    KH = KW = 3
    Hp, Wp = H + 2, W + 2       # spatial pad = 1
    HW = H * W

    Cpad = _round_up(Cout, 128)     # lane-dense feature width
    NCpad = _round_up(NC, 128)      # lane-dense logits width
    TB = _pick_images_per_step(B, HW, target_rows=4096,
                               num_cores=_num_tensorcores())
    grid = (B // TB,)
    inv_hw = 1.0 / HW

    # prenorm=False -> nn.Identity()
    # TODO(synk): LabNorm prenorm path not implemented (module default is Identity).
    # In-kernel im2col: ship only the padded bf16 image; lane index = wp*Cin + c.
    x_nhwc = jnp.transpose(x_nchw, (0, 2, 3, 1)).astype(jnp.bfloat16)
    xp = jnp.pad(x_nhwc, ((0, 0), (1, 1), (1, 1), (0, 0)))
    img = xp.reshape(B, Hp, Wp * Cin)                               # (B, Hp, Wp*Cin)

    # Block-Toeplitz conv weights (kw folded into K, kh handled by row offsets):
    #   wexp[kh, wp*Cin + c, w*Cout + o] = conv_w[o, c, kh, wp - w] for 0<=wp-w<=2.
    # Grid-invariant, loaded once; trades a W-fold weight blow-up for a 9x
    # smaller activation stream (activations dominate HBM traffic).
    wt = jnp.transpose(conv_w, (2, 3, 1, 0)).astype(jnp.float32)    # (KH,KW,Cin,Cout)
    sel = (jnp.arange(Wp)[None, None, :] ==
           (jnp.arange(W)[:, None, None] + jnp.arange(KW)[None, :, None])
           ).astype(jnp.float32)                                    # (W, KW, Wp)
    wexp = jnp.einsum("wkp,hkco->hpcwo", sel, wt)
    wexp = wexp.reshape(KH, Wp * Cin, W * Cout).astype(jnp.bfloat16)

    b1 = jnp.tile(conv_b.astype(jnp.float32), W).reshape(1, W * Cout)
    # Pooling matrix: sums the W lane-groups and folds in the 1/HW mean scale;
    # padded output channels stay exactly zero through ReLU/pool/head.
    pool = jnp.zeros((W * Cout, Cpad), jnp.float32).at[:, :Cout].set(
        jnp.tile(jnp.eye(Cout, dtype=jnp.float32), (W, 1)) * inv_hw)
    # Head weight in bf16 (f32 accumulation): halves HBM/VMEM for real TIMM heads.
    whp = jnp.zeros((Cpad, NCpad), jnp.bfloat16).at[:Cout, :NC].set(
        jnp.transpose(head_w).astype(jnp.bfloat16))
    bhp = jnp.zeros((1, NCpad), jnp.float32).at[:, :NC].set(head_b.astype(jnp.float32))

    def kernel(img_ref, wexp_ref, b1_ref, pool_ref, wh_ref, bh_ref,
               feat_ref, logit_ref):
        # 3x3 conv as 3 tall bf16 MXU matmuls with f32 accumulation: one matmul
        # per row offset kh; the kw taps live in the block-Toeplitz K dimension.
        # (H is a multiple of 8 here so the leading-dim collapse is tile-aligned.)
        acc = jnp.zeros((TB * H, W * Cout), jnp.float32)
        for kh in range(KH):
            lhs = img_ref[:, kh:kh + H, :].reshape(TB * H, Wp * Cin)
            acc = acc + jnp.dot(lhs, wexp_ref[kh],
                                preferred_element_type=jnp.float32)
        act = jnp.maximum(acc + b1_ref[...], 0.0)                  # (TB*H, W*Cout)
        # Global average pool: sum over H (sublanes), then a tiny matmul sums
        # the W lane-groups and applies the 1/HW scale.
        hsum = jnp.sum(act.reshape(TB, H, W * Cout), axis=1)       # (TB, W*Cout)
        feats = jnp.dot(hsum, pool_ref[...],
                        preferred_element_type=jnp.float32)        # (TB, Cpad) f32
        feat_ref[...] = feats
        # Linear head (bf16 weights, f32 accumulation), batched over TB images.
        logits = jnp.dot(feats.astype(jnp.bfloat16), wh_ref[...],
                         preferred_element_type=jnp.float32) + bh_ref[...]
        logit_ref[...] = logits

    # TODO(synk): once single-buffered invariant inputs are confirmed supported,
    # mark the weight BlockSpecs with pipeline_mode=pl.Buffered(1) to avoid
    # double-buffering multi-MiB real TIMM heads under v7x's 64 MiB VMEM.
    feat, logit = pl.pallas_call(
        kernel,
        out_shape=(jax.ShapeDtypeStruct((B, Cpad), jnp.float32),
                   jax.ShapeDtypeStruct((B, NCpad), jnp.float32)),
        grid_spec=pltpu.PrefetchScalarGridSpec(
            num_scalar_prefetch=0,
            grid=grid,
            in_specs=[
                pl.BlockSpec((TB, Hp, Wp * Cin), lambda i: (i, 0, 0)),      # image
                pl.BlockSpec((KH, Wp * Cin, W * Cout), lambda i: (0, 0, 0)),  # conv W
                pl.BlockSpec((1, W * Cout), lambda i: (0, 0)),              # conv b
                pl.BlockSpec((W * Cout, Cpad), lambda i: (0, 0)),           # pool
                pl.BlockSpec((Cpad, NCpad), lambda i: (0, 0)),              # head W
                pl.BlockSpec((1, NCpad), lambda i: (0, 0)),                 # head b
            ],
            out_specs=[
                pl.BlockSpec((TB, Cpad), lambda i: (i, 0)),
                pl.BlockSpec((TB, NCpad), lambda i: (i, 0)),
            ],
        ),
        compiler_params=pltpu.CompilerParams(
            dimension_semantics=("parallel",),
            vmem_limit_bytes=48 * 1024 * 1024),
    )(img, wexp, b1, pool, whp, bhp)

    features = feat[:, :Cout]
    logits = logit[:, :NC]
    return {prefix: {"logits": logits, "features": features}}


def _reference(x_nchw, params):
    """Pure-JAX reference modelling the kernel's bf16-rounded input streams."""
    xb = x_nchw.astype(jnp.bfloat16).astype(jnp.float32)
    wb = params["conv_w"].astype(jnp.bfloat16).astype(jnp.float32)
    out = jax.lax.conv_general_dilated(
        xb, wb, window_strides=(1, 1), padding="SAME",
        dimension_numbers=("NCHW", "OIHW", "NCHW"),
        precision=jax.lax.Precision.HIGHEST)
    out = out + params["conv_b"].astype(jnp.float32)[None, :, None, None]
    out = jnp.maximum(out, 0.0)
    feats = jnp.mean(out, axis=(2, 3))                             # (B, Cout) f32
    fb = feats.astype(jnp.bfloat16).astype(jnp.float32)
    hwb = params["head_w"].astype(jnp.bfloat16).astype(jnp.float32)
    logits = jnp.dot(fb, hwb.T, precision=jax.lax.Precision.HIGHEST) \
        + params["head_b"].astype(jnp.float32)
    return feats, logits


if __name__ == "__main__":
    key = jax.random.PRNGKey(0)
    B, Cin, H, W = 2, 4, 16, 16
    Cout, NC = 32, 10

    k1, k2, k3, k4 = jax.random.split(key, 4)
    x = jax.random.normal(k1, (B, Cin, H, W), jnp.float32)
    params = {
        "conv_w": 0.1 * jax.random.normal(k2, (Cout, Cin, 3, 3), jnp.float32),
        "conv_b": 0.01 * jax.random.normal(k3, (Cout,), jnp.float32),
        "head_w": 0.1 * jax.random.normal(k4, (NC, Cout), jnp.float32),
        "head_b": jnp.zeros((NC,), jnp.float32),
    }

    batch = {"img_image": x}
    fwd = jax.jit(functools.partial(timm_pallas, prefix="img"))
    out = fwd(batch["img_image"], params)
    jax.block_until_ready(out)

    ref_feat, ref_logits = _reference(x, params)
    assert jnp.allclose(out["img"]["features"], ref_feat, rtol=1e-3, atol=1e-3)
    assert jnp.allclose(out["img"]["logits"], ref_logits, rtol=5e-3, atol=5e-3)

    print("KERNEL_OK")
</pallas_src>

<mosaic_0001>
module attributes {stable_mosaic.version = 11 : i64} {
  func.func @kernel(%arg0: i32, %arg1: memref<2x18x72xbf16, #tpu.memory_space<vmem>>, %arg2: memref<3x72x512xbf16, #tpu.memory_space<vmem>>, %arg3: memref<1x512xf32, #tpu.memory_space<vmem>>, %arg4: memref<512x128xf32, #tpu.memory_space<vmem>>, %arg5: memref<128x128xbf16, #tpu.memory_space<vmem>>, %arg6: memref<1x128xf32, #tpu.memory_space<vmem>>, %arg7: memref<2x128xf32, #tpu.memory_space<vmem>>, %arg8: memref<2x128xf32, #tpu.memory_space<vmem>>) attributes {dimension_semantics = [#tpu.dimension_semantics<parallel>], iteration_bounds = array<i64: 1>, scalar_prefetch = 0 : i64, scratch_operands = 0 : i64, tpu.core_type = #tpu.core_type<tc>, window_params = [{transform_indices = @transform_0, window_bounds = array<i64: 2, 18, 72>}, {pipeline_mode = #tpu.pipeline_mode<synchronous>, transform_indices = @transform_1, window_bounds = array<i64: 3, 72, 512>}, {pipeline_mode = #tpu.pipeline_mode<synchronous>, transform_indices = @transform_2, window_bounds = array<i64: 1, 512>}, {pipeline_mode = #tpu.pipeline_mode<synchronous>, transform_indices = @transform_3, window_bounds = array<i64: 512, 128>}, {pipeline_mode = #tpu.pipeline_mode<synchronous>, transform_indices = @transform_4, window_bounds = array<i64: 128, 128>}, {pipeline_mode = #tpu.pipeline_mode<synchronous>, transform_indices = @transform_5, window_bounds = array<i64: 1, 128>}, {transform_indices = @transform_6, window_bounds = array<i64: 2, 128>}, {transform_indices = @transform_7, window_bounds = array<i64: 2, 128>}]} {
    %cst = arith.constant 0.000000e+00 : f32
    %0 = vector.broadcast %cst : f32 to vector<32x512xf32>
    %c0 = arith.constant 0 : index
    %c0_0 = arith.constant 0 : index
    %c0_1 = arith.constant 0 : index
    %1 = vector.load %arg1[%c0, %c0_0, %c0_1] : memref<2x18x72xbf16, #tpu.memory_space<vmem>>, vector<2x16x72xbf16>
    %2 = vector.shape_cast %1 : vector<2x16x72xbf16> to vector<32x72xbf16>
    %c0_2 = arith.constant 0 : index
    %c0_3 = arith.constant 0 : index
    %c0_4 = arith.constant 0 : index
    %3 = vector.load %arg2[%c0_2, %c0_3, %c0_4] : memref<3x72x512xbf16, #tpu.memory_space<vmem>>, vector<1x72x512xbf16>
    %4 = vector.shape_cast %3 : vector<1x72x512xbf16> to vector<72x512xbf16>
    %cst_5 = arith.constant dense<0.000000e+00> : vector<32x512xf32>
    %5 = tpu.matmul %2, %4, %cst_5 {dimension_numbers = #tpu.dot_dimension_numbers<[1], [0], [0], [1], [0, 0, 1, 1], [], []>} : vector<32x72xbf16>, vector<72x512xbf16>, vector<32x512xf32> -> vector<32x512xf32>
    %6 = arith.addf %0, %5 : vector<32x512xf32>
    %c0_6 = arith.constant 0 : index
    %c1 = arith.constant 1 : index
    %c0_7 = arith.constant 0 : index
    %7 = vector.load %arg1[%c0_6, %c1, %c0_7] : memref<2x18x72xbf16, #tpu.memory_space<vmem>>, vector<2x16x72xbf16>
    %8 = vector.shape_cast %7 : vector<2x16x72xbf16> to vector<32x72xbf16>
    %c1_8 = arith.constant 1 : index
    %c0_9 = arith.constant 0 : index
    %c0_10 = arith.constant 0 : index
    %9 = vector.load %arg2[%c1_8, %c0_9, %c0_10] : memref<3x72x512xbf16, #tpu.memory_space<vmem>>, vector<1x72x512xbf16>
    %10 = vector.shape_cast %9 : vector<1x72x512xbf16> to vector<72x512xbf16>
    %cst_11 = arith.constant dense<0.000000e+00> : vector<32x512xf32>
    %11 = tpu.matmul %8, %10, %cst_11 {dimension_numbers = #tpu.dot_dimension_numbers<[1], [0], [0], [1], [0, 0, 1, 1], [], []>} : vector<32x72xbf16>, vector<72x512xbf16>, vector<32x512xf32> -> vector<32x512xf32>
    %12 = arith.addf %6, %11 : vector<32x512xf32>
    %c0_12 = arith.constant 0 : index
    %c2 = arith.constant 2 : index
    %c0_13 = arith.constant 0 : index
    %13 = vector.load %arg1[%c0_12, %c2, %c0_13] : memref<2x18x72xbf16, #tpu.memory_space<vmem>>, vector<2x16x72xbf16>
    %14 = vector.shape_cast %13 : vector<2x16x72xbf16> to vector<32x72xbf16>
    %c2_14 = arith.constant 2 : index
    %c0_15 = arith.constant 0 : index
    %c0_16 = arith.constant 0 : index
    %15 = vector.load %arg2[%c2_14, %c0_15, %c0_16] : memref<3x72x512xbf16, #tpu.memory_space<vmem>>, vector<1x72x512xbf16>
    %16 = vector.shape_cast %15 : vector<1x72x512xbf16> to vector<72x512xbf16>
    %cst_17 = arith.constant dense<0.000000e+00> : vector<32x512xf32>
    %17 = tpu.matmul %14, %16, %cst_17 {dimension_numbers = #tpu.dot_dimension_numbers<[1], [0], [0], [1], [0, 0, 1, 1], [], []>} : vector<32x72xbf16>, vector<72x512xbf16>, vector<32x512xf32> -> vector<32x512xf32>
    %18 = arith.addf %12, %17 : vector<32x512xf32>
    %c0_18 = arith.constant 0 : index
    %c0_19 = arith.constant 0 : index
    %19 = vector.load %arg3[%c0_18, %c0_19] : memref<1x512xf32, #tpu.memory_space<vmem>>, vector<1x512xf32>
    %20 = vector.broadcast %19 : vector<1x512xf32> to vector<32x512xf32>
    %21 = arith.addf %18, %20 : vector<32x512xf32>
    %cst_20 = arith.constant 0.000000e+00 : f32
    %22 = vector.broadcast %cst_20 : f32 to vector<32x512xf32>
    %23 = arith.maximumf %21, %22 : vector<32x512xf32>
    %24 = vector.shape_cast %23 : vector<32x512xf32> to vector<2x16x512xf32>
    %cst_21 = arith.constant dense<0.000000e+00> : vector<2x512xf32>
    %25 = vector.multi_reduction <add>, %24, %cst_21 [1] : vector<2x16x512xf32> to vector<2x512xf32>
    %c0_22 = arith.constant 0 : index
    %c0_23 = arith.constant 0 : index
    %26 = vector.load %arg4[%c0_22, %c0_23] : memref<512x128xf32, #tpu.memory_space<vmem>>, vector<512x128xf32>
    %cst_24 = arith.constant dense<0.000000e+00> : vector<2x128xf32>
    %27 = tpu.matmul %25, %26, %cst_24 {dimension_numbers = #tpu.dot_dimension_numbers<[1], [0], [0], [1], [0, 0, 1, 1], [], []>} : vector<2x512xf32>, vector<512x128xf32>, vector<2x128xf32> -> vector<2x128xf32>
    %c0_25 = arith.constant 0 : index
    %c0_26 = arith.constant 0 : index
    %28 = vector.load %arg7[%c0_25, %c0_26] : memref<2x128xf32, #tpu.memory_space<vmem>>, vector<2x128xf32>
    tpu.vector_store %arg7[%c0_25, %c0_26], %27 {strides = array<i32>} : memref<2x128xf32, #tpu.memory_space<vmem>>, vector<2x128xf32>,
    %29 = arith.truncf %27 : vector<2x128xf32> to vector<2x128xbf16>
    %c0_27 = arith.constant 0 : index
    %c0_28 = arith.constant 0 : index
    %30 = vector.load %arg5[%c0_27, %c0_28] : memref<128x128xbf16, #tpu.memory_space<vmem>>, vector<128x128xbf16>
    %cst_29 = arith.constant dense<0.000000e+00> : vector<2x128xf32>
    %31 = tpu.matmul %29, %30, %cst_29 {dimension_numbers = #tpu.dot_dimension_numbers<[1], [0], [0], [1], [0, 0, 1, 1], [], []>} : vector<2x128xbf16>, vector<128x128xbf16>, vector<2x128xf32> -> vector<2x128xf32>
    %c0_30 = arith.constant 0 : index
    %c0_31 = arith.constant 0 : index
    %32 = vector.load %arg6[%c0_30, %c0_31] : memref<1x128xf32, #tpu.memory_space<vmem>>, vector<1x128xf32>
    %33 = vector.broadcast %32 : vector<1x128xf32> to vector<2x128xf32>
    %34 = arith.addf %31, %33 : vector<2x128xf32>
    %c0_32 = arith.constant 0 : index
    %c0_33 = arith.constant 0 : index
    %35 = vector.load %arg8[%c0_32, %c0_33] : memref<2x128xf32, #tpu.memory_space<vmem>>, vector<2x128xf32>
    tpu.vector_store %arg8[%c0_32, %c0_33], %34 {strides = array<i32>} : memref<2x128xf32, #tpu.memory_space<vmem>>, vector<2x128xf32>,
    return
  }
  func.func @transform_0(%arg0: i32) -> (i32, i32, i32) {
    %c0_i32 = arith.constant 0 : i32
    %c0_i32_0 = arith.constant 0 : i32
    %c0_i32_1 = arith.constant 0 : i32
    return %arg0, %c0_i32, %c0_i32_0 : i32, i32, i32
  }
  func.func @transform_1(%arg0: i32) -> (i32, i32, i32) {
    %c0_i32 = arith.constant 0 : i32
    %c0_i32_0 = arith.constant 0 : i32
    %c0_i32_1 = arith.constant 0 : i32
    %c0_i32_2 = arith.constant 0 : i32
    return %c0_i32, %c0_i32_0, %c0_i32_1 : i32, i32, i32
  }
  func.func @transform_2(%arg0: i32) -> (i32, i32) {
    %c0_i32 = arith.constant 0 : i32
    %c0_i32_0 = arith.constant 0 : i32
    %c0_i32_1 = arith.constant 0 : i32
    return %c0_i32, %c0_i32_0 : i32, i32
  }
  func.func @transform_3(%arg0: i32) -> (i32, i32) {
    %c0_i32 = arith.constant 0 : i32
    %c0_i32_0 = arith.constant 0 : i32
    %c0_i32_1 = arith.constant 0 : i32
    return %c0_i32, %c0_i32_0 : i32, i32
  }
  func.func @transform_4(%arg0: i32) -> (i32, i32) {
    %c0_i32 = arith.constant 0 : i32
    %c0_i32_0 = arith.constant 0 : i32
    %c0_i32_1 = arith.constant 0 : i32
    return %c0_i32, %c0_i32_0 : i32, i32
  }
  func.func @transform_5(%arg0: i32) -> (i32, i32) {
    %c0_i32 = arith.constant 0 : i32
    %c0_i32_0 = arith.constant 0 : i32
    %c0_i32_1 = arith.constant 0 : i32
    return %c0_i32, %c0_i32_0 : i32, i32
  }
  func.func @transform_6(%arg0: i32) -> (i32, i32) {
    %c0_i32 = arith.constant 0 : i32
    %c0_i32_0 = arith.constant 0 : i32
    return %arg0, %c0_i32 : i32, i32
  }
  func.func @transform_7(%arg0: i32) -> (i32, i32) {
    %c0_i32 = arith.constant 0 : i32
    %c0_i32_0 = arith.constant 0 : i32
    return %arg0, %c0_i32 : i32, i32
  }
}

</mosaic_0001>

<llo_original>
// kernel: tile.13
$region0: #{tile.13}
  #allocation0 [shape = 's32[1]{0}', space=sflag, size = 0x4, scoped, tag = 'scoped memory for tile.13']
  %s0 = inlined_call_operand.vmem [shape: f32[32], index: 0, kind: input, shape index: {}]
  %s1 = inlined_call_operand.vmem [shape: f32[16,32], index: 1, kind: output, shape index: {}]
  // Predicated region
  $region2: #{tile.13} parent=0 // pred_check
    _
  $region3: #{tile.13} parent=0 // pred_check_branch
    %3 = sbr.rel (0) target = $region5
  $region4: #{tile.13} parent=0 // pred_region
    _
  $region5: #{tile.13} parent=0 // pred_fallthru
    _
  %v4 = vld [vmem:[%s0] ss:$0 sm:$0xff]
  %5 = vst [vmem:[%s1] sm:$0xff] %v4
  %s6 = scalar_lea.vmem %s1, 8
  %7 = vst [vmem:[%s6] sm:$0xff] %v4

// kernel: tile.14
$region0: #{tile.14}
  %s0 = inlined_call_operand.vmem [shape: f32[16,32], index: 0, kind: input, shape index: {}]
  %s1 = inlined_call_operand.vmem [shape: f32[1,512], index: 1, kind: output, shape index: {}]
  $region1: #{tile.14} parent=0
    #allocation0 [shape = 'u8[16384]{0}', space=vmem, size = 0x4000, scoped, tag = 'scoped mem for output reshape']
    %v2 = vld [vmem:[%s0] ss:$4 sm:$0xf]
    %vm3 = vcmask 261120
    %4 = vst.msk [vmem:[#allocation0] ss:$8 sm:$0xf] %vm3, %v2
    %s5 = scalar_lea.vmem %s0, 3
    %v6 = vld [vmem:[%s5] ss:$4 sm:$0xf]
    %7 = vrot.lane.b32.xlu0 %v6, 96
    %v8 = vpop.permute.xlu0 %7
    %vm9 = vcmask 1048320
    %10 = vst.msk [vmem:[#allocation0] ss:$8 sm:$0xf] %vm9, %v8
    %s11 = scalar_lea.vmem %s0, 2
    %v12 = vld [vmem:[%s11] ss:$4 sm:$0xf]
    %13 = vrot.lane.b32.xlu0 %v12, 64
    %v14 = vpop.permute.xlu0 %13
    %vm15 = vcmask 785920
    %16 = vst.msk [vmem:[#allocation0] ss:$8 sm:$0xf] %vm15, %v14
    %s17 = scalar_lea.vmem %s0, 1
    %v18 = vld [vmem:[%s17] ss:$4 sm:$0xf]
    %19 = vrot.lane.b32.xlu0 %v18, 32
    %v20 = vpop.permute.xlu0 %19
    %vm21 = vcmask 523520
    %22 = vst.msk [vmem:[#allocation0] ss:$8 sm:$0xf] %vm21, %v20
    %s24 = sshllo.u32 0, 1
    %v26 = vld [vmem:[#allocation0] sm:%s24]
    %s27 = sshllo.u32 0, 1
    %28 = vst [vmem:[%s1] sm:%s27] %v26
    %s29 = scalar_lea.vmem [#allocation0], 8
    %v30 = vld [vmem:[%s29] sm:%s24]
    %s31 = sshllo.u32 0, 1
    %s32 = scalar_lea.vmem %s1, 1
    %33 = vst [vmem:[%s32] sm:%s31] %v30
    %s34 = scalar_lea.vmem [#allocation0], 16
    %v35 = vld [vmem:[%s34] sm:%s24]
    %s36 = sshllo.u32 0, 1
    %s37 = smul.addr 1, 2
    %s38 = scalar_lea.vmem %s1, %s37
    %39 = vst [vmem:[%s38] sm:%s36] %v35
    %s40 = scalar_lea.vmem [#allocation0], 24
    %v41 = vld [vmem:[%s40] sm:%s24]
    %s42 = sshllo.u32 0, 1
    %s43 = smul.addr 1, 3
    %s44 = scalar_lea.vmem %s1, %s43
    %45 = vst [vmem:[%s44] sm:%s42] %v41

// kernel: timm_pallas.1
$region0: #{timm_pallas.1}
  #allocation0 [shape = 'u32[]', space=smem, size = 0x4, offset = 0x4, fixed_abs, tag = 'smem constant byte address 0x4 - core index']
  #allocation1 [shape = 'u32[144,128]{1,0:T(1,128)}', space=vmem, size = 0x12000, scoped, tag = 'internal scratch']
  %s0 = inlined_call_operand.vmem [shape: bf16[2,18,72], index: 0, kind: input, shape index: {}]
  %s1 = inlined_call_operand.vmem [shape: bf16[3,72,512], index: 1, kind: input, shape index: {}]
  %s2 = inlined_call_operand.vmem [shape: f32[1,512], index: 2, kind: input, shape index: {}]
  %s3 = inlined_call_operand.vmem [shape: f32[512,128], index: 3, kind: input, shape index: {}]
  %s4 = inlined_call_operand.vmem [shape: bf16[128,128], index: 4, kind: input, shape index: {}]
  %s5 = inlined_call_operand.vmem [shape: f32[1,128], index: 5, kind: input, shape index: {}]
  %s6 = inlined_call_operand.hbm [shape: f32[2,128], index: 6, kind: output, shape index: {0}]
  %s7 = inlined_call_operand.hbm [shape: f32[2,128], index: 7, kind: output, shape index: {1}]
  %8 = xla_tuple %s6, %s7
  %s9 = sld [smem:[#allocation0]]
  $region42: #{timm_pallas.1} parent=0
    _
  %s11 = ssub.s32 1, %s9
  %s12 = scalar_select 0, %s11, %s9
  $region1: #{timm_pallas.1} parent=0
    #allocation2 [shape = 'u8[1024]{0}', space=vmem, size = 0x400, scoped, tag = 'output window, operand 0, single buffered']
    #allocation3 [shape = 's32[1]{0}', space=sflag, size = 0x4, scoped, tag = 'scoped memory for timm_pallas.1']
    #allocation4 [shape = 'u8[1024]{0}', space=vmem, size = 0x400, scoped, tag = 'output window, operand 1, single buffered']
    #allocation5 [shape = 's32[1]{0}', space=sflag, size = 0x4, scoped, tag = 'scoped memory for timm_pallas.1']
    %13 = vsyncpa [#allocation3], 0
    %14 = vsyncpa [#allocation5], 0
    // Predicated region
    $region2: #{timm_pallas.1} parent=1 // pred_check
      _
    $region3: #{timm_pallas.1} parent=1 // pred_check_branch
      %16 = sbr.rel (0) target = $region5
    $region4: #{timm_pallas.1} parent=1 // pred_region
      _
    $region5: #{timm_pallas.1} parent=1 // pred_fallthru
      _
    // Predicated region
    $region6: #{timm_pallas.1} parent=1 // pred_check
      _
    $region7: #{timm_pallas.1} parent=1 // pred_check_branch
      %18 = sbr.rel (0) target = $region9
    $region8: #{timm_pallas.1} parent=1 // pred_region
      _
    $region9: #{timm_pallas.1} parent=1 // pred_fallthru
      _
    // Predicated region
    $region10: #{timm_pallas.1} parent=1 // pred_check
      _
    $region11: #{timm_pallas.1} parent=1 // pred_check_branch
      %20 = sbr.rel (0) target = $region13
    $region12: #{timm_pallas.1} parent=1 // pred_region
      _
    $region13: #{timm_pallas.1} parent=1 // pred_fallthru
      _
    // Predicated region
    $region14: #{timm_pallas.1} parent=1 // pred_check
      _
    $region15: #{timm_pallas.1} parent=1 // pred_check_branch
      %22 = sbr.rel (0) target = $region17
    $region16: #{timm_pallas.1} parent=1 // pred_region
      _
    $region17: #{timm_pallas.1} parent=1 // pred_fallthru
      _
    // Predicated region
    $region18: #{timm_pallas.1} parent=1 // pred_check
      _
    $region19: #{timm_pallas.1} parent=1 // pred_check_branch
      %24 = sbr.rel (0) target = $region21
    $region20: #{timm_pallas.1} parent=1 // pred_region
      _
    $region21: #{timm_pallas.1} parent=1 // pred_fallthru
      _
    // Predicated region
    $region22: #{timm_pallas.1} parent=1 // pred_check
      _
    $region23: #{timm_pallas.1} parent=1 // pred_check_branch
      %26 = sbr.rel (0) target = $region25
    $region24: #{timm_pallas.1} parent=1 // pred_region
      _
    $region25: #{timm_pallas.1} parent=1 // pred_fallthru
      _
    %v28 = vld [vmem:[%s0] sm:$0xf]
    %v29 = vld [vmem:[%s0 + $0x4] sm:$0xf]
    %v30 = vld [vmem:[%s0 + $0xc] sm:$0xf]
    %v31 = vld [vmem:[%s0 + $0x10] sm:$0xf]
    %v32 = vld [vmem:[%s1] sm:$0xff]
    %v33 = vld [vmem:[%s1 + $0x8] sm:$0xff]
    %v34 = vld [vmem:[%s1 + $0x10] sm:$0xff]
    %v35 = vld [vmem:[%s1 + $0x18] sm:$0xff]
    %v36 = vld [vmem:[%s1 + $0x20] sm:$0xff]
    %v37 = vld [vmem:[%s1 + $0x28] sm:$0xff]
    %v38 = vld [vmem:[%s1 + $0x30] sm:$0xff]
    %v39 = vld [vmem:[%s1 + $0x38] sm:$0xff]
    %v40 = vld [vmem:[%s1 + $0x40] sm:$0xff]
    %v41 = vld [vmem:[%s1 + $0x48] sm:$0xff]
    %v42 = vld [vmem:[%s1 + $0x50] sm:$0xff]
    %v43 = vld [vmem:[%s1 + $0x58] sm:$0xff]
    %v44 = vld [vmem:[%s1 + $0x60] sm:$0xff]
    %v45 = vld [vmem:[%s1 + $0x68] sm:$0xff]
    %v46 = vld [vmem:[%s1 + $0x70] sm:$0xff]
    %v47 = vld [vmem:[%s1 + $0x78] sm:$0xff]
    %v48 = vld [vmem:[%s1 + $0x80] sm:$0xff]
    %v49 = vld [vmem:[%s1 + $0x88] sm:$0xff]
    %v50 = vld [vmem:[%s0 + $0x8] sm:$0x1]
    %v51 = vld [vmem:[%s0 + $0x14] sm:$0x1]
    %vm52 = vsmask.f32 3328
    %vm53 = vsmask.f32 7440
    %vm54 = vmor %vm52, %vm53
    %v56 = vshrl.u32 %v28, 16
    %v58 = vrot.slane %v56, 4
    %v59 = vshll.u32 %v28, 16
    %v61 = vrot.slane %v59, 5
    %v62 = vor.u32 %v58, %v61
    %v63 = vrot.slane %v62, 4
    %v65 = vshll.u32 %v29, 16
    %v67 = vrot.slane %v65, 5
    %v68 = vsel %vm54, %v63, %v67
    %v69 = vshrl.u32 %v29, 16
    %v71 = vrot.slane %v69, 4
    %v72 = vor.u32 %v71, %v67
    %v73 = vrot.slane %v72, 4
    %v75 = vshll.u32 %v50, 16
    %v77 = vrot.slane %v75, 5
    %v78 = vsel %vm54, %v73, %v77
    %v80 = vshrl.u32 %v30, 16
    %v82 = vrot.slane %v80, 4
    %v83 = vshll.u32 %v30, 16
    %v85 = vrot.slane %v83, 5
    %v86 = vor.u32 %v82, %v85
    %v87 = vrot.slane %v86, 4
    %v89 = vshll.u32 %v31, 16
    %v91 = vrot.slane %v89, 5
    %v92 = vsel %vm54, %v87, %v91
    %v93 = vshrl.u32 %v31, 16
    %v95 = vrot.slane %v93, 4
    %v96 = vor.u32 %v95, %v91
    %v97 = vrot.slane %v96, 4
    %v99 = vshll.u32 %v51, 16
    %v101 = vrot.slane %v99, 5
    %v102 = vsel %vm54, %v97, %v101
    %s103 = scalar_lea.vmem %s1, 144
    %v104 = vld [vmem:[%s103] sm:$0xff]
    %v105 = vld [vmem:[%s103 + $0x8] sm:$0xff]
    %v106 = vld [vmem:[%s103 + $0x10] sm:$0xff]
    %v107 = vld [vmem:[%s103 + $0x18] sm:$0xff]
    %v108 = vld [vmem:[%s103 + $0x20] sm:$0xff]
    %v109 = vld [vmem:[%s103 + $0x28] sm:$0xff]
    %v110 = vld [vmem:[%s103 + $0x30] sm:$0xff]
    %v111 = vld [vmem:[%s103 + $0x38] sm:$0xff]
    %v112 = vld [vmem:[%s103 + $0x40] sm:$0xff]
    %v113 = vld [vmem:[%s103 + $0x48] sm:$0xff]
    %v114 = vld [vmem:[%s103 + $0x50] sm:$0xff]
    %v115 = vld [vmem:[%s103 + $0x58] sm:$0xff]
    %v116 = vld [vmem:[%s103 + $0x60] sm:$0xff]
    %v117 = vld [vmem:[%s103 + $0x68] sm:$0xff]
    %v118 = vld [vmem:[%s103 + $0x70] sm:$0xff]
    %v119 = vld [vmem:[%s103 + $0x78] sm:$0xff]
    %v120 = vld [vmem:[%s103 + $0x80] sm:$0xff]
    %v121 = vld [vmem:[%s103 + $0x88] sm:$0xff]
    %v122 = vunpack.c.l.b16 %v68
    %v123 = vunpack.c.l.b16 %v78
    %v124 = vunpack.c.l.b16 %v92
    %v125 = vunpack.c.l.b16 %v102
    %v126 = vpack.c.b16 %v123, %v122
    %v127 = vpack.c.b16 %v125, %v124
    %v146 = vunpack.c.l.b16 %v104
    %v147 = vunpack.c.h.b16 %v104
    %v148 = vunpack.c.l.b16 %v105
    %v149 = vunpack.c.h.b16 %v105
    %v150 = vunpack.c.l.b16 %v106
    %v151 = vunpack.c.h.b16 %v106
    %v152 = vunpack.c.l.b16 %v107
    %v153 = vunpack.c.h.b16 %v107
    %v154 = vunpack.c.l.b16 %v108
    %v155 = vunpack.c.h.b16 %v108
    %v156 = vunpack.c.l.b16 %v109
    %v157 = vunpack.c.h.b16 %v109
    %v158 = vunpack.c.l.b16 %v110
    %v159 = vunpack.c.h.b16 %v110
    %v160 = vunpack.c.l.b16 %v111
    %v161 = vunpack.c.h.b16 %v111
    %v162 = vunpack.c.l.b16 %v112
    %v163 = vunpack.c.h.b16 %v112
    %v164 = vunpack.c.l.b16 %v113
    %v165 = vunpack.c.h.b16 %v113
    %v166 = vunpack.c.l.b16 %v114
    %v167 = vunpack.c.h.b16 %v114
    %v168 = vunpack.c.l.b16 %v115
    %v169 = vunpack.c.h.b16 %v115
    %v170 = vunpack.c.l.b16 %v116
    %v171 = vunpack.c.h.b16 %v116
    %v172 = vunpack.c.l.b16 %v117
    %v173 = vunpack.c.h.b16 %v117
    %v174 = vunpack.c.l.b16 %v118
    %v175 = vunpack.c.h.b16 %v118
    %v176 = vunpack.c.l.b16 %v119
    %v177 = vunpack.c.h.b16 %v119
    %v178 = vunpack.c.l.b16 %v120
    %v179 = vunpack.c.h.b16 %v120
    %v180 = vunpack.c.l.b16 %v121
    %v181 = vunpack.c.h.b16 %v121
    %v182 = vpack.c.b16 %v150, %v146
    %v183 = vpack.c.b16 %v151, %v147
    %v184 = vpack.c.b16 %v152, %v148
    %v185 = vpack.c.b16 %v153, %v149
    %v186 = vpack.c.b16 %v158, %v154
    %v187 = vpack.c.b16 %v159, %v155
    %v188 = vpack.c.b16 %v160, %v156
    %v189 = vpack.c.b16 %v161, %v157
    %v190 = vpack.c.b16 %v166, %v162
    %v191 = vpack.c.b16 %v167, %v163
    %v192 = vpack.c.b16 %v168, %v164
    %v193 = vpack.c.b16 %v169, %v165
    %v194 = vpack.c.b16 %v174, %v170
    %v195 = vpack.c.b16 %v175, %v171
    %v196 = vpack.c.b16 %v176, %v172
    %v197 = vpack.c.b16 %v177, %v173
    %v198 = vpack.c.b16 %v178, %v178
    %v199 = vpack.c.b16 %v179, %v179
    %v200 = vpack.c.b16 %v180, %v180
    %v201 = vpack.c.b16 %v181, %v181
    %vm218 = vcmask 588800
    %v220 = vsel %vm218, %v126, 0
    %v223 = vsel %vm218, %v127, 0
    %vm225 = vcmask 1043456
    %v227 = vsel %vm225, %v198, 0
    %v230 = vsel %vm225, %v199, 0
    %v233 = vsel %vm225, %v200, 0
    %v236 = vsel %vm225, %v201, 0
    %238 = vmatprep.subr.bf16.mxu0 %v183
    %239 = vmatpush1.bf16.msra.mxu0 %v182
    %240 = vmatprep.subr.bf16.mxu0 %v187
    %241 = vmatpush1.bf16.msra.mxu0 %v186
    %242 = vmatprep.subr.bf16.mxu0 %v191
    %243 = vmatpush1.bf16.msra.mxu0 %v190
    %244 = vmatprep.subr.bf16.mxu0 %v195
    %245 = vmatpush1.bf16.msra.mxu0 %v194
    %246 = vmatprep.subr.bf16.mxu0 %v230
    %247 = vmatpush1.bf16.msra.mxu0 %v227
    %248 = vmatprep.subr.bf16.mxu0 0
    %249 = vmatpush1.bf16.msra.mxu0 0
    %250 = vmatprep.subr.bf16.mxu0 0
    %251 = vmatpush1.bf16.msra.mxu0 0
    %252 = vmatprep.subr.bf16.mxu0 0
    %253 = vmatpush1.bf16.msra.mxu0 0
    %254 = vmatprep.subr.bf16.mxu0 0
    %255 = vmatpush1.bf16.msra.mxu0 0
    %256 = vmatprep.subr.bf16.mxu0 0
    %257 = vmatpush1.bf16.msra.mxu0 0
    %258 = vmatprep.subr.bf16.mxu0 0
    %259 = vmatpush1.bf16.msra.mxu0 0
    %260 = vmatprep.subr.bf16.mxu0 0
    %261 = vmatpush1.bf16.msra.mxu0 0
    %262 = vmatprep.subr.bf16.mxu0 0
    %263 = vmatpush1.bf16.msra.mxu0 0
    %264 = vmatprep.subr.bf16.mxu0 0
    %265 = vmatpush1.bf16.msra.mxu0 0
    %266 = vmatprep.subr.bf16.mxu0 0
    %267 = vmatpush1.bf16.msra.mxu0 0
    %268 = vmatprep.subr.bf16.mxu0 0
    %269 = vmatpush1.bf16.msra.mxu0 0
    %270 = vmatprep.mubr.bf16.mxu0 0
    %271 = vmatmul.mubr.bf16.gmra.mrb[0].mxu0 %v220
    %v272 = vpop.f32.mrb[0].mxu0
    %v273 = vadd.f32 0.0, %v272
    %v274 = vpop.f32.mrb[0].mxu0
    %v275 = vadd.f32 0.0, %v274
    %v276 = vpop.f32.mrb[0].mxu0
    %v277 = vadd.f32 0.0, %v276
    %v278 = vpop.f32.mrb[0].mxu0
    %v279 = vadd.f32 0.0, %v278
    %280 = vmatprep.mubr.bf16.mxu0 0
    %281 = vmatmul.mubr.bf16.gmra.mrb[0].mxu0 %v223
    %v282 = vpop.f32.mrb[0].mxu0
    %v283 = vadd.f32 0.0, %v282
    %v284 = vpop.f32.mrb[0].mxu0
    %v285 = vadd.f32 0.0, %v284
    %v286 = vpop.f32.mrb[0].mxu0
    %v287 = vadd.f32 0.0, %v286
    %v288 = vpop.f32.mrb[0].mxu0
    %v289 = vadd.f32 0.0, %v288
    %290 = vdwg.mxu0
    %291 = vmatprep.subr.bf16.mxu0 %v185
    %292 = vmatpush1.bf16.msra.mxu0 %v184
    %293 = vmatprep.subr.bf16.mxu0 %v189
    %294 = vmatpush1.bf16.msra.mxu0 %v188
    %295 = vmatprep.subr.bf16.mxu0 %v193
    %296 = vmatpush1.bf16.msra.mxu0 %v192
    %297 = vmatprep.subr.bf16.mxu0 %v197
    %298 = vmatpush1.bf16.msra.mxu0 %v196
    %299 = vmatprep.subr.bf16.mxu0 %v236
    %300 = vmatpush1.bf16.msra.mxu0 %v233
    %301 = vmatprep.subr.bf16.mxu0 0
    %302 = vmatpush1.bf16.msra.mxu0 0
    %303 = vmatprep.subr.bf16.mxu0 0
    %304 = vmatpush1.bf16.msra.mxu0 0
    %305 = vmatprep.subr.bf16.mxu0 0
    %306 = vmatpush1.bf16.msra.mxu0 0
    %307 = vmatprep.subr.bf16.mxu0 0
    %308 = vmatpush1.bf16.msra.mxu0 0
    %309 = vmatprep.subr.bf16.mxu0 0
    %310 = vmatpush1.bf16.msra.mxu0 0
    %311 = vmatprep.subr.bf16.mxu0 0
    %312 = vmatpush1.bf16.msra.mxu0 0
    %313 = vmatprep.subr.bf16.mxu0 0
    %314 = vmatpush1.bf16.msra.mxu0 0
    %315 = vmatprep.subr.bf16.mxu0 0
    %316 = vmatpush1.bf16.msra.mxu0 0
    %317 = vmatprep.subr.bf16.mxu0 0
    %318 = vmatpush1.bf16.msra.mxu0 0
    %319 = vmatprep.subr.bf16.mxu0 0
    %320 = vmatpush1.bf16.msra.mxu0 0
    %321 = vmatprep.subr.bf16.mxu0 0
    %322 = vmatpush1.bf16.msra.mxu0 0
    %323 = vmatprep.mubr.bf16.mxu0 0
    %324 = vmatmul.mubr.bf16.gmra.mrb[0].mxu0 %v220
    %v325 = vpop.f32.mrb[0].mxu0
    %v326 = vadd.f32 0.0, %v325
    %v327 = vpop.f32.mrb[0].mxu0
    %v328 = vadd.f32 0.0, %v327
    %v329 = vpop.f32.mrb[0].mxu0
    %v330 = vadd.f32 0.0, %v329
    %v331 = vpop.f32.mrb[0].mxu0
    %v332 = vadd.f32 0.0, %v331
    %333 = vmatprep.mubr.bf16.mxu0 0
    %334 = vmatmul.mubr.bf16.gmra.mrb[0].mxu0 %v223
    %v335 = vpop.f32.mrb[0].mxu0
    %v336 = vadd.f32 0.0, %v335
    %v337 = vpop.f32.mrb[0].mxu0
    %v338 = vadd.f32 0.0, %v337
    %v339 = vpop.f32.mrb[0].mxu0
    %v340 = vadd.f32 0.0, %v339
    %v341 = vpop.f32.mrb[0].mxu0
    %v342 = vadd.f32 0.0, %v341
    %343 = vdwg.mxu0
    %v348 = vunpack.c.l.b16 %v28
    %v349 = vunpack.c.l.b16 %v29
    %v350 = vunpack.c.l.b16 %v30
    %v351 = vunpack.c.l.b16 %v31
    %v352 = vpack.c.b16 %v349, %v348
    %v353 = vpack.c.b16 %v351, %v350
    %v372 = vunpack.c.l.b16 %v32
    %v373 = vunpack.c.h.b16 %v32
    %v374 = vunpack.c.l.b16 %v33
    %v375 = vunpack.c.h.b16 %v33
    %v376 = vunpack.c.l.b16 %v34
    %v377 = vunpack.c.h.b16 %v34
    %v378 = vunpack.c.l.b16 %v35
    %v379 = vunpack.c.h.b16 %v35
    %v380 = vunpack.c.l.b16 %v36
    %v381 = vunpack.c.h.b16 %v36
    %v382 = vunpack.c.l.b16 %v37
    %v383 = vunpack.c.h.b16 %v37
    %v384 = vunpack.c.l.b16 %v38
    %v385 = vunpack.c.h.b16 %v38
    %v386 = vunpack.c.l.b16 %v39
    %v387 = vunpack.c.h.b16 %v39
    %v388 = vunpack.c.l.b16 %v40
    %v389 = vunpack.c.h.b16 %v40
    %v390 = vunpack.c.l.b16 %v41
    %v391 = vunpack.c.h.b16 %v41
    %v392 = vunpack.c.l.b16 %v42
    %v393 = vunpack.c.h.b16 %v42
    %v394 = vunpack.c.l.b16 %v43
    %v395 = vunpack.c.h.b16 %v43
    %v396 = vunpack.c.l.b16 %v44
    %v397 = vunpack.c.h.b16 %v44
    %v398 = vunpack.c.l.b16 %v45
    %v399 = vunpack.c.h.b16 %v45
    %v400 = vunpack.c.l.b16 %v46
    %v401 = vunpack.c.h.b16 %v46
    %v402 = vunpack.c.l.b16 %v47
    %v403 = vunpack.c.h.b16 %v47
    %v404 = vunpack.c.l.b16 %v48
    %v405 = vunpack.c.h.b16 %v48
    %v406 = vunpack.c.l.b16 %v49
    %v407 = vunpack.c.h.b16 %v49
    %v408 = vpack.c.b16 %v376, %v372
    %v409 = vpack.c.b16 %v377, %v373
    %v410 = vpack.c.b16 %v378, %v374
    %v411 = vpack.c.b16 %v379, %v375
    %v412 = vpack.c.b16 %v384, %v380
    %v413 = vpack.c.b16 %v385, %v381
    %v414 = vpack.c.b16 %v386, %v382
    %v415 = vpack.c.b16 %v387, %v383
    %v416 = vpack.c.b16 %v392, %v388
    %v417 = vpack.c.b16 %v393, %v389
    %v418 = vpack.c.b16 %v394, %v390
    %v419 = vpack.c.b16 %v395, %v391
    %v420 = vpack.c.b16 %v400, %v396
    %v421 = vpack.c.b16 %v401, %v397
    %v422 = vpack.c.b16 %v402, %v398
    %v423 = vpack.c.b16 %v403, %v399
    %v424 = vpack.c.b16 %v404, %v404
    %v425 = vpack.c.b16 %v405, %v405
    %v426 = vpack.c.b16 %v406, %v406
    %v427 = vpack.c.b16 %v407, %v407
    %v445 = vsel %vm218, %v352, 0
    %v448 = vsel %vm218, %v353, 0
    %v451 = vsel %vm225, %v424, 0
    %v454 = vsel %vm225, %v425, 0
    %v457 = vsel %vm225, %v426, 0
    %v460 = vsel %vm225, %v427, 0
    %462 = vmatprep.subr.bf16.mxu0 %v409
    %463 = vmatpush1.bf16.msra.mxu0 %v408
    %464 = vmatprep.subr.bf16.mxu0 %v413
    %465 = vmatpush1.bf16.msra.mxu0 %v412
    %466 = vmatprep.subr.bf16.mxu0 %v417
    %467 = vmatpush1.bf16.msra.mxu0 %v416
    %468 = vmatprep.subr.bf16.mxu0 %v421
    %469 = vmatpush1.bf16.msra.mxu0 %v420
    %470 = vmatprep.subr.bf16.mxu0 %v454
    %471 = vmatpush1.bf16.msra.mxu0 %v451
    %472 = vmatprep.subr.bf16.mxu0 0
    %473 = vmatpush1.bf16.msra.mxu0 0
    %474 = vmatprep.subr.bf16.mxu0 0
    %475 = vmatpush1.bf16.msra.mxu0 0
    %476 = vmatprep.subr.bf16.mxu0 0
    %477 = vmatpush1.bf16.msra.mxu0 0
    %478 = vmatprep.subr.bf16.mxu0 0
    %479 = vmatpush1.bf16.msra.mxu0 0
    %480 = vmatprep.subr.bf16.mxu0 0
    %481 = vmatpush1.bf16.msra.mxu0 0
    %482 = vmatprep.subr.bf16.mxu0 0
    %483 = vmatpush1.bf16.msra.mxu0 0
    %484 = vmatprep.subr.bf16.mxu0 0
    %485 = vmatpush1.bf16.msra.mxu0 0
    %486 = vmatprep.subr.bf16.mxu0 0
    %487 = vmatpush1.bf16.msra.mxu0 0
    %488 = vmatprep.subr.bf16.mxu0 0
    %489 = vmatpush1.bf16.msra.mxu0 0
    %490 = vmatprep.subr.bf16.mxu0 0
    %491 = vmatpush1.bf16.msra.mxu0 0
    %492 = vmatprep.subr.bf16.mxu0 0
    %493 = vmatpush1.bf16.msra.mxu0 0
    %494 = vmatprep.mubr.bf16.mxu0 0
    %495 = vmatmul.mubr.bf16.gmra.mrb[0].mxu0 %v445
    %v496 = vpop.f32.mrb[0].mxu0
    %v497 = vadd.f32 %v273, %v496
    %v498 = vpop.f32.mrb[0].mxu0
    %v499 = vadd.f32 %v275, %v498
    %v500 = vpop.f32.mrb[0].mxu0
    %v501 = vadd.f32 %v277, %v500
    %v502 = vpop.f32.mrb[0].mxu0
    %v503 = vadd.f32 %v279, %v502
    %504 = vmatprep.mubr.bf16.mxu0 0
    %505 = vmatmul.mubr.bf16.gmra.mrb[0].mxu0 %v448
    %v506 = vpop.f32.mrb[0].mxu0
    %v507 = vadd.f32 %v283, %v506
    %v508 = vpop.f32.mrb[0].mxu0
    %v509 = vadd.f32 %v285, %v508
    %v510 = vpop.f32.mrb[0].mxu0
    %v511 = vadd.f32 %v287, %v510
    %v512 = vpop.f32.mrb[0].mxu0
    %v513 = vadd.f32 %v289, %v512
    %514 = vdwg.mxu0
    %515 = vmatprep.subr.bf16.mxu0 %v411
    %516 = vmatpush1.bf16.msra.mxu0 %v410
    %517 = vmatprep.subr.bf16.mxu0 %v415
    %518 = vmatpush1.bf16.msra.mxu0 %v414
    %519 = vmatprep.subr.bf16.mxu0 %v419
    %520 = vmatpush1.bf16.msra.mxu0 %v418
    %521 = vmatprep.subr.bf16.mxu0 %v423
    %522 = vmatpush1.bf16.msra.mxu0 %v422
    %523 = vmatprep.subr.bf16.mxu0 %v460
    %524 = vmatpush1.bf16.msra.mxu0 %v457
    %525 = vmatprep.subr.bf16.mxu0 0
    %526 = vmatpush1.bf16.msra.mxu0 0
    %527 = vmatprep.subr.bf16.mxu0 0
    %528 = vmatpush1.bf16.msra.mxu0 0
    %529 = vmatprep.subr.bf16.mxu0 0
    %530 = vmatpush1.bf16.msra.mxu0 0
    %531 = vmatprep.subr.bf16.mxu0 0
    %532 = vmatpush1.bf16.msra.mxu0 0
    %533 = vmatprep.subr.bf16.mxu0 0
    %534 = vmatpush1.bf16.msra.mxu0 0
    %535 = vmatprep.subr.bf16.mxu0 0
    %536 = vmatpush1.bf16.msra.mxu0 0
    %537 = vmatprep.subr.bf16.mxu0 0
    %538 = vmatpush1.bf16.msra.mxu0 0
    %539 = vmatprep.subr.bf16.mxu0 0
    %540 = vmatpush1.bf16.msra.mxu0 0
    %541 = vmatprep.subr.bf16.mxu0 0
    %542 = vmatpush1.bf16.msra.mxu0 0
    %543 = vmatprep.subr.bf16.mxu0 0
    %544 = vmatpush1.bf16.msra.mxu0 0
    %545 = vmatprep.subr.bf16.mxu0 0
    %546 = vmatpush1.bf16.msra.mxu0 0
    %547 = vmatprep.mubr.bf16.mxu0 0
    %548 = vmatmul.mubr.bf16.gmra.mrb[0].mxu0 %v445
    %v549 = vpop.f32.mrb[0].mxu0
    %v550 = vadd.f32 %v326, %v549
    %v551 = vpop.f32.mrb[0].mxu0
    %v552 = vadd.f32 %v328, %v551
    %v553 = vpop.f32.mrb[0].mxu0
    %v554 = vadd.f32 %v330, %v553
    %v555 = vpop.f32.mrb[0].mxu0
    %v556 = vadd.f32 %v332, %v555
    %557 = vmatprep.mubr.bf16.mxu0 0
    %558 = vmatmul.mubr.bf16.gmra.mrb[0].mxu0 %v448
    %v559 = vpop.f32.mrb[0].mxu0
    %v560 = vadd.f32 %v336, %v559
    %v561 = vpop.f32.mrb[0].mxu0
    %v562 = vadd.f32 %v338, %v561
    %v563 = vpop.f32.mrb[0].mxu0
    %v564 = vadd.f32 %v340, %v563
    %v565 = vpop.f32.mrb[0].mxu0
    %v566 = vadd.f32 %v342, %v565
    %567 = vdwg.mxu0
    %v568 = vld [vmem:[%s0] sm:$0xe]
    %v569 = vld [vmem:[%s0 + $0xc] sm:$0xe]
    %vm574 = vcmask 1042432
    %vm575 = vcmask 1046532
    %vm576 = vmor %vm574, %vm575
    %v577 = vrot.slane %v568, 5
    %v578 = vrot.slane %v577, 4
    %v579 = vrot.slane %v29, 5
    %v580 = vsel %vm576, %v578, %v579
    %v581 = vrot.slane %v579, 4
    %v582 = vrot.slane %v50, 5
    %v583 = vsel %vm576, %v581, %v582
    %v584 = vrot.slane %v569, 5
    %v585 = vrot.slane %v584, 4
    %v586 = vrot.slane %v31, 5
    %v587 = vsel %vm576, %v585, %v586
    %v588 = vrot.slane %v586, 4
    %v589 = vrot.slane %v51, 5
    %v590 = vsel %vm576, %v588, %v589
    %s591 = scalar_lea.vmem %s1, 288
    %v592 = vld [vmem:[%s591] sm:$0xff]
    %v593 = vld [vmem:[%s591 + $0x8] sm:$0xff]
    %v594 = vld [vmem:[%s591 + $0x10] sm:$0xff]
    %v595 = vld [vmem:[%s591 + $0x18] sm:$0xff]
    %v596 = vld [vmem:[%s591 + $0x20] sm:$0xff]
    %v597 = vld [vmem:[%s591 + $0x28] sm:$0xff]
    %v598 = vld [vmem:[%s591 + $0x30] sm:$0xff]
    %v599 = vld [vmem:[%s591 + $0x38] sm:$0xff]
    %v600 = vld [vmem:[%s591 + $0x40] sm:$0xff]
    %v601 = vld [vmem:[%s591 + $0x48] sm:$0xff]
    %v602 = vld [vmem:[%s591 + $0x50] sm:$0xff]
    %v603 = vld [vmem:[%s591 + $0x58] sm:$0xff]
    %v604 = vld [vmem:[%s591 + $0x60] sm:$0xff]
    %v605 = vld [vmem:[%s591 + $0x68] sm:$0xff]
    %v606 = vld [vmem:[%s591 + $0x70] sm:$0xff]
    %v607 = vld [vmem:[%s591 + $0x78] sm:$0xff]
    %v608 = vld [vmem:[%s591 + $0x80] sm:$0xff]
    %v609 = vld [vmem:[%s591 + $0x88] sm:$0xff]
    %v610 = vunpack.c.l.b16 %v580
    %v611 = vunpack.c.l.b16 %v583
    %v612 = vunpack.c.l.b16 %v587
    %v613 = vunpack.c.l.b16 %v590
    %v614 = vpack.c.b16 %v611, %v610
    %v615 = vpack.c.b16 %v613, %v612
    %v634 = vunpack.c.l.b16 %v592
    %v635 = vunpack.c.h.b16 %v592
    %v636 = vunpack.c.l.b16 %v593
    %v637 = vunpack.c.h.b16 %v593
    %v638 = vunpack.c.l.b16 %v594
    %v639 = vunpack.c.h.b16 %v594
    %v640 = vunpack.c.l.b16 %v595
    %v641 = vunpack.c.h.b16 %v595
    %v642 = vunpack.c.l.b16 %v596
    %v643 = vunpack.c.h.b16 %v596
    %v644 = vunpack.c.l.b16 %v597
    %v645 = vunpack.c.h.b16 %v597
    %v646 = vunpack.c.l.b16 %v598
    %v647 = vunpack.c.h.b16 %v598
    %v648 = vunpack.c.l.b16 %v599
    %v649 = vunpack.c.h.b16 %v599
    %v650 = vunpack.c.l.b16 %v600
    %v651 = vunpack.c.h.b16 %v600
    %v652 = vunpack.c.l.b16 %v601
    %v653 = vunpack.c.h.b16 %v601
    %v654 = vunpack.c.l.b16 %v602
    %v655 = vunpack.c.h.b16 %v602
    %v656 = vunpack.c.l.b16 %v603
    %v657 = vunpack.c.h.b16 %v603
    %v658 = vunpack.c.l.b16 %v604
    %v659 = vunpack.c.h.b16 %v604
    %v660 = vunpack.c.l.b16 %v605
    %v661 = vunpack.c.h.b16 %v605
    %v662 = vunpack.c.l.b16 %v606
    %v663 = vunpack.c.h.b16 %v606
    %v664 = vunpack.c.l.b16 %v607
    %v665 = vunpack.c.h.b16 %v607
    %v666 = vunpack.c.l.b16 %v608
    %v667 = vunpack.c.h.b16 %v608
    %v668 = vunpack.c.l.b16 %v609
    %v669 = vunpack.c.h.b16 %v609
    %v670 = vpack.c.b16 %v638, %v634
    %v671 = vpack.c.b16 %v639, %v635
    %v672 = vpack.c.b16 %v640, %v636
    %v673 = vpack.c.b16 %v641, %v637
    %v674 = vpack.c.b16 %v646, %v642
    %v675 = vpack.c.b16 %v647, %v643
    %v676 = vpack.c.b16 %v648, %v644
    %v677 = vpack.c.b16 %v649, %v645
    %v678 = vpack.c.b16 %v654, %v650
    %v679 = vpack.c.b16 %v655, %v651
    %v680 = vpack.c.b16 %v656, %v652
    %v681 = vpack.c.b16 %v657, %v653
    %v682 = vpack.c.b16 %v662, %v658
    %v683 = vpack.c.b16 %v663, %v659
    %v684 = vpack.c.b16 %v664, %v660
    %v685 = vpack.c.b16 %v665, %v661
    %v686 = vpack.c.b16 %v666, %v666
    %v687 = vpack.c.b16 %v667, %v667
    %v688 = vpack.c.b16 %v668, %v668
    %v689 = vpack.c.b16 %v669, %v669
    %v707 = vsel %vm218, %v614, 0
    %v710 = vsel %vm218, %v615, 0
    %v713 = vsel %vm225, %v686, 0
    %v716 = vsel %vm225, %v687, 0
    %v719 = vsel %vm225, %v688, 0
    %v722 = vsel %vm225, %v689, 0
    %724 = vmatprep.subr.bf16.mxu0 %v671
    %725 = vmatpush1.bf16.msra.mxu0 %v670
    %726 = vmatprep.subr.bf16.mxu0 %v675
    %727 = vmatpush1.bf16.msra.mxu0 %v674
    %728 = vmatprep.subr.bf16.mxu0 %v679
    %729 = vmatpush1.bf16.msra.mxu0 %v678
    %730 = vmatprep.subr.bf16.mxu0 %v683
    %731 = vmatpush1.bf16.msra.mxu0 %v682
    %732 = vmatprep.subr.bf16.mxu0 %v716
    %733 = vmatpush1.bf16.msra.mxu0 %v713
    %734 = vmatprep.subr.bf16.mxu0 0
    %735 = vmatpush1.bf16.msra.mxu0 0
    %736 = vmatprep.subr.bf16.mxu0 0
    %737 = vmatpush1.bf16.msra.mxu0 0
    %738 = vmatprep.subr.bf16.mxu0 0
    %739 = vmatpush1.bf16.msra.mxu0 0
    %740 = vmatprep.subr.bf16.mxu0 0
    %741 = vmatpush1.bf16.msra.mxu0 0
    %742 = vmatprep.subr.bf16.mxu0 0
    %743 = vmatpush1.bf16.msra.mxu0 0
    %744 = vmatprep.subr.bf16.mxu0 0
    %745 = vmatpush1.bf16.msra.mxu0 0
    %746 = vmatprep.subr.bf16.mxu0 0
    %747 = vmatpush1.bf16.msra.mxu0 0
    %748 = vmatprep.subr.bf16.mxu0 0
    %749 = vmatpush1.bf16.msra.mxu0 0
    %750 = vmatprep.subr.bf16.mxu0 0
    %751 = vmatpush1.bf16.msra.mxu0 0
    %752 = vmatprep.subr.bf16.mxu0 0
    %753 = vmatpush1.bf16.msra.mxu0 0
    %754 = vmatprep.subr.bf16.mxu0 0
    %755 = vmatpush1.bf16.msra.mxu0 0
    %756 = vmatprep.mubr.bf16.mxu0 0
    %757 = vmatmul.mubr.bf16.gmra.mrb[0].mxu0 %v707
    %v758 = vpop.f32.mrb[0].mxu0
    %v759 = vadd.f32 0.0, %v758
    %v760 = vpop.f32.mrb[0].mxu0
    %v761 = vadd.f32 0.0, %v760
    %v762 = vpop.f32.mrb[0].mxu0
    %v763 = vadd.f32 0.0, %v762
    %v764 = vpop.f32.mrb[0].mxu0
    %v765 = vadd.f32 0.0, %v764
    %766 = vmatprep.mubr.bf16.mxu0 0
    %767 = vmatmul.mubr.bf16.gmra.mrb[0].mxu0 %v710
    %v768 = vpop.f32.mrb[0].mxu0
    %v769 = vadd.f32 0.0, %v768
    %v770 = vpop.f32.mrb[0].mxu0
    %v771 = vadd.f32 0.0, %v770
    %v772 = vpop.f32.mrb[0].mxu0
    %v773 = vadd.f32 0.0, %v772
    %v774 = vpop.f32.mrb[0].mxu0
    %v775 = vadd.f32 0.0, %v774
    %776 = vdwg.mxu0
    %777 = vmatprep.subr.bf16.mxu0 %v673
    %778 = vmatpush1.bf16.msra.mxu0 %v672
    %779 = vmatprep.subr.bf16.mxu0 %v677
    %780 = vmatpush1.bf16.msra.mxu0 %v676
    %781 = vmatprep.subr.bf16.mxu0 %v681
    %782 = vmatpush1.bf16.msra.mxu0 %v680
    %783 = vmatprep.subr.bf16.mxu0 %v685
    %784 = vmatpush1.bf16.msra.mxu0 %v684
    %785 = vmatprep.subr.bf16.mxu0 %v722
    %786 = vmatpush1.bf16.msra.mxu0 %v719
    %787 = vmatprep.subr.bf16.mxu0 0
    %788 = vmatpush1.bf16.msra.mxu0 0
    %789 = vmatprep.subr.bf16.mxu0 0
    %790 = vmatpush1.bf16.msra.mxu0 0
    %791 = vmatprep.subr.bf16.mxu0 0
    %792 = vmatpush1.bf16.msra.mxu0 0
    %793 = vmatprep.subr.bf16.mxu0 0
    %794 = vmatpush1.bf16.msra.mxu0 0
    %795 = vmatprep.subr.bf16.mxu0 0
    %796 = vmatpush1.bf16.msra.mxu0 0
    %797 = vmatprep.subr.bf16.mxu0 0
    %798 = vmatpush1.bf16.msra.mxu0 0
    %799 = vmatprep.subr.bf16.mxu0 0
    %800 = vmatpush1.bf16.msra.mxu0 0
    %801 = vmatprep.subr.bf16.mxu0 0
    %802 = vmatpush1.bf16.msra.mxu0 0
    %803 = vmatprep.subr.bf16.mxu0 0
    %804 = vmatpush1.bf16.msra.mxu0 0
    %805 = vmatprep.subr.bf16.mxu0 0
    %806 = vmatpush1.bf16.msra.mxu0 0
    %807 = vmatprep.subr.bf16.mxu0 0
    %808 = vmatpush1.bf16.msra.mxu0 0
    %809 = vmatprep.mubr.bf16.mxu0 0
    %810 = vmatmul.mubr.bf16.gmra.mrb[0].mxu0 %v707
    %v811 = vpop.f32.mrb[0].mxu0
    %v812 = vadd.f32 0.0, %v811
    %v813 = vpop.f32.mrb[0].mxu0
    %v814 = vadd.f32 0.0, %v813
    %v815 = vpop.f32.mrb[0].mxu0
    %v816 = vadd.f32 0.0, %v815
    %v817 = vpop.f32.mrb[0].mxu0
    %v818 = vadd.f32 0.0, %v817
    %819 = vmatprep.mubr.bf16.mxu0 0
    %820 = vmatmul.mubr.bf16.gmra.mrb[0].mxu0 %v710
    %v821 = vpop.f32.mrb[0].mxu0
    %v822 = vadd.f32 0.0, %v821
    %v823 = vpop.f32.mrb[0].mxu0
    %v824 = vadd.f32 0.0, %v823
    %v825 = vpop.f32.mrb[0].mxu0
    %v826 = vadd.f32 0.0, %v825
    %v827 = vpop.f32.mrb[0].mxu0
    %v828 = vadd.f32 0.0, %v827
    %829 = vdwg.mxu0
    %v830 = vadd.f32 %v497, %v759
    %v831 = vadd.f32 %v499, %v761
    %v832 = vadd.f32 %v550, %v812
    %v833 = vadd.f32 %v552, %v814
    %v834 = vadd.f32 %v501, %v763
    %v835 = vadd.f32 %v503, %v765
    %v836 = vadd.f32 %v554, %v816
    %v837 = vadd.f32 %v556, %v818
    %v838 = vadd.f32 %v507, %v769
    %v839 = vadd.f32 %v509, %v771
    %v840 = vadd.f32 %v560, %v822
    %v841 = vadd.f32 %v562, %v824
    %v842 = vadd.f32 %v511, %v773
    %v843 = vadd.f32 %v513, %v775
    %v844 = vadd.f32 %v564, %v826
    %v845 = vadd.f32 %v566, %v828
    %v846 = vld [vmem:[%s2] sm:$0xf]
    %v848 = vlaneseq
    %v849 = vshrl.u32 %v848, 7
    %v850 = vsub.s32 0, %v849
    %v851 = vrot.slane %v846, %v850
    %v852 = vlaneseq
    %v853 = vshrl.u32 %v852, 7
    %v854 = vsub.s32 1, %v853
    %v855 = vrot.slane %v846, %v854
    %v856 = vlaneseq
    %v857 = vshrl.u32 %v856, 7
    %v858 = vsub.s32 2, %v857
    %v859 = vrot.slane %v846, %v858
    %v860 = vlaneseq
    %v861 = vshrl.u32 %v860, 7
    %v862 = vsub.s32 3, %v861
    %v863 = vrot.slane %v846, %v862
    %v868 = vadd.f32 %v830, %v851
    %v869 = vadd.f32 %v831, %v855
    %v870 = vadd.f32 %v832, %v859
    %v871 = vadd.f32 %v833, %v863
    %v872 = vadd.f32 %v834, %v851
    %v873 = vadd.f32 %v835, %v855
    %v874 = vadd.f32 %v836, %v859
    %v875 = vadd.f32 %v837, %v863
    %v876 = vadd.f32 %v838, %v851
    %v877 = vadd.f32 %v839, %v855
    %v878 = vadd.f32 %v840, %v859
    %v879 = vadd.f32 %v841, %v863
    %v880 = vadd.f32 %v842, %v851
    %v881 = vadd.f32 %v843, %v855
    %v882 = vadd.f32 %v844, %v859
    %v883 = vadd.f32 %v845, %v863
    %v884 = vmax.f32 %v868, 0.0
    %v885 = vmax.f32 %v869, 0.0
    %v886 = vmax.f32 %v870, 0.0
    %v887 = vmax.f32 %v871, 0.0
    %v888 = vmax.f32 %v872, 0.0
    %v889 = vmax.f32 %v873, 0.0
    %v890 = vmax.f32 %v874, 0.0
    %v891 = vmax.f32 %v875, 0.0
    %v892 = vmax.f32 %v876, 0.0
    %v893 = vmax.f32 %v877, 0.0
    %v894 = vmax.f32 %v878, 0.0
    %v895 = vmax.f32 %v879, 0.0
    %v896 = vmax.f32 %v880, 0.0
    %v897 = vmax.f32 %v881, 0.0
    %v898 = vmax.f32 %v882, 0.0
    %v899 = vmax.f32 %v883, 0.0
    %v900 = vadd.f32 %v884, %v888
    %v901 = vrot.slane %v900, 4
    %v902 = vadd.f32 %v900, %v901
    %v903 = vrot.slane %v902, 2
    %v904 = vadd.f32 %v902, %v903
    %v905 = vrot.slane %v904, 1
    %v906 = vadd.f32 %v904, %v905
    %v907 = vadd.f32 %v885, %v889
    %v908 = vrot.slane %v907, 4
    %v909 = vadd.f32 %v907, %v908
    %v910 = vrot.slane %v909, 2
    %v911 = vadd.f32 %v909, %v910
    %v912 = vrot.slane %v911, 1
    %v913 = vadd.f32 %v911, %v912
    %v914 = vadd.f32 %v886, %v890
    %v915 = vrot.slane %v914, 4
    %v916 = vadd.f32 %v914, %v915
    %v917 = vrot.slane %v916, 2
    %v918 = vadd.f32 %v916, %v917
    %v919 = vrot.slane %v918, 1
    %v920 = vadd.f32 %v918, %v919
    %v921 = vadd.f32 %v887, %v891
    %v922 = vrot.slane %v921, 4
    %v923 = vadd.f32 %v921, %v922
    %v924 = vrot.slane %v923, 2
    %v925 = vadd.f32 %v923, %v924
    %v926 = vrot.slane %v925, 1
    %v927 = vadd.f32 %v925, %v926
    %v928 = vadd.f32 %v892, %v896
    %v929 = vrot.slane %v928, 4
    %v930 = vadd.f32 %v928, %v929
    %v931 = vrot.slane %v930, 2
    %v932 = vadd.f32 %v930, %v931
    %v933 = vrot.slane %v932, 1
    %v934 = vadd.f32 %v932, %v933
    %v935 = vadd.f32 %v893, %v897
    %v936 = vrot.slane %v935, 4
    %v937 = vadd.f32 %v935, %v936
    %v938 = vrot.slane %v937, 2
    %v939 = vadd.f32 %v937, %v938
    %v940 = vrot.slane %v939, 1
    %v941 = vadd.f32 %v939, %v940
    %v942 = vadd.f32 %v894, %v898
    %v943 = vrot.slane %v942, 4
    %v944 = vadd.f32 %v942, %v943
    %v945 = vrot.slane %v944, 2
    %v946 = vadd.f32 %v944, %v945
    %v947 = vrot.slane %v946, 1
    %v948 = vadd.f32 %v946, %v947
    %v949 = vadd.f32 %v895, %v899
    %v950 = vrot.slane %v949, 4
    %v951 = vadd.f32 %v949, %v950
    %v952 = vrot.slane %v951, 2
    %v953 = vadd.f32 %v951, %v952
    %v954 = vrot.slane %v953, 1
    %v955 = vadd.f32 %v953, %v954
    %v956 = vld [vmem:[%s3] sm:$0xff]
    %v957 = vld [vmem:[%s3 + $0x8] sm:$0xff]
    %v958 = vld [vmem:[%s3 + $0x10] sm:$0xff]
    %v959 = vld [vmem:[%s3 + $0x18] sm:$0xff]
    %v960 = vld [vmem:[%s3 + $0x20] sm:$0xff]
    %v961 = vld [vmem:[%s3 + $0x28] sm:$0xff]
    %v962 = vld [vmem:[%s3 + $0x30] sm:$0xff]
    %v963 = vld [vmem:[%s3 + $0x38] sm:$0xff]
    %v964 = vld [vmem:[%s3 + $0x40] sm:$0xff]
    %v965 = vld [vmem:[%s3 + $0x48] sm:$0xff]
    %v966 = vld [vmem:[%s3 + $0x50] sm:$0xff]
    %v967 = vld [vmem:[%s3 + $0x58] sm:$0xff]
    %v968 = vld [vmem:[%s3 + $0x60] sm:$0xff]
    %v969 = vld [vmem:[%s3 + $0x68] sm:$0xff]
    %v970 = vld [vmem:[%s3 + $0x70] sm:$0xff]
    %v971 = vld [vmem:[%s3 + $0x78] sm:$0xff]
    %v972 = vld [vmem:[%s3 + $0x80] sm:$0xff]
    %v973 = vld [vmem:[%s3 + $0x88] sm:$0xff]
    %v974 = vld [vmem:[%s3 + $0x90] sm:$0xff]
    %v975 = vld [vmem:[%s3 + $0x98] sm:$0xff]
    %v976 = vld [vmem:[%s3 + $0xa0] sm:$0xff]
    %v977 = vld [vmem:[%s3 + $0xa8] sm:$0xff]
    %v978 = vld [vmem:[%s3 + $0xb0] sm:$0xff]
    %v979 = vld [vmem:[%s3 + $0xb8] sm:$0xff]
    %v980 = vld [vmem:[%s3 + $0xc0] sm:$0xff]
    %v981 = vld [vmem:[%s3 + $0xc8] sm:$0xff]
    %v982 = vld [vmem:[%s3 + $0xd0] sm:$0xff]
    %v983 = vld [vmem:[%s3 + $0xd8] sm:$0xff]
    %v984 = vld [vmem:[%s3 + $0xe0] sm:$0xff]
    %v985 = vld [vmem:[%s3 + $0xe8] sm:$0xff]
    %v986 = vld [vmem:[%s3 + $0xf0] sm:$0xff]
    %v987 = vld [vmem:[%s3 + $0xf8] sm:$0xff]
    %v988 = vld [vmem:[%s3 + $0x100] sm:$0xff]
    %v989 = vld [vmem:[%s3 + $0x108] sm:$0xff]
    %v990 = vld [vmem:[%s3 + $0x110] sm:$0xff]
    %v991 = vld [vmem:[%s3 + $0x118] sm:$0xff]
    %v992 = vld [vmem:[%s3 + $0x120] sm:$0xff]
    %v993 = vld [vmem:[%s3 + $0x128] sm:$0xff]
    %v994 = vld [vmem:[%s3 + $0x130] sm:$0xff]
    %v995 = vld [vmem:[%s3 + $0x138] sm:$0xff]
    %v996 = vld [vmem:[%s3 + $0x140] sm:$0xff]
    %v997 = vld [vmem:[%s3 + $0x148] sm:$0xff]
    %v998 = vld [vmem:[%s3 + $0x150] sm:$0xff]
    %v999 = vld [vmem:[%s3 + $0x158] sm:$0xff]
    %v1000 = vld [vmem:[%s3 + $0x160] sm:$0xff]
    %v1001 = vld [vmem:[%s3 + $0x168] sm:$0xff]
    %v1002 = vld [vmem:[%s3 + $0x170] sm:$0xff]
    %v1003 = vld [vmem:[%s3 + $0x178] sm:$0xff]
    %v1004 = vld [vmem:[%s3 + $0x180] sm:$0xff]
    %v1005 = vld [vmem:[%s3 + $0x188] sm:$0xff]
    %v1006 = vld [vmem:[%s3 + $0x190] sm:$0xff]
    %v1007 = vld [vmem:[%s3 + $0x198] sm:$0xff]
    %v1008 = vld [vmem:[%s3 + $0x1a0] sm:$0xff]
    %v1009 = vld [vmem:[%s3 + $0x1a8] sm:$0xff]
    %v1010 = vld [vmem:[%s3 + $0x1b0] sm:$0xff]
    %v1011 = vld [vmem:[%s3 + $0x1b8] sm:$0xff]
    %v1012 = vld [vmem:[%s3 + $0x1c0] sm:$0xff]
    %v1013 = vld [vmem:[%s3 + $0x1c8] sm:$0xff]
    %v1014 = vld [vmem:[%s3 + $0x1d0] sm:$0xff]
    %v1015 = vld [vmem:[%s3 + $0x1d8] sm:$0xff]
    %v1016 = vld [vmem:[%s3 + $0x1e0] sm:$0xff]
    %v1017 = vld [vmem:[%s3 + $0x1e8] sm:$0xff]
    %v1018 = vld [vmem:[%s3 + $0x1f0] sm:$0xff]
    %v1019 = vld [vmem:[%s3 + $0x1f8] sm:$0xff]
    %vm1028 = vcmask 1041409
    %v1029 = vsel %vm1028, %v934, %v906
    %v1030 = vsel %vm1028, %v941, %v913
    %v1031 = vsel %vm1028, %v948, %v920
    %v1032 = vsel %vm1028, %v955, %v927
    %1037 = vmatprep.subr.mxu0 0.0
    %1038 = vmatpush1.msra.mxu0 %v956
    %1039 = vmatprep.subr.mxu0 0.0
    %1040 = vmatpush1.msra.mxu0 %v957
    %1041 = vmatprep.subr.mxu0 0.0
    %1042 = vmatpush1.msra.mxu0 %v958
    %1043 = vmatprep.subr.mxu0 0.0
    %1044 = vmatpush1.msra.mxu0 %v959
    %1045 = vmatprep.subr.mxu0 0.0
    %1046 = vmatpush1.msra.mxu0 %v960
    %1047 = vmatprep.subr.mxu0 0.0
    %1048 = vmatpush1.msra.mxu0 %v961
    %1049 = vmatprep.subr.mxu0 0.0
    %1050 = vmatpush1.msra.mxu0 %v962
    %1051 = vmatprep.subr.mxu0 0.0
    %1052 = vmatpush1.msra.mxu0 %v963
    %1053 = vmatprep.subr.mxu0 0.0
    %1054 = vmatpush1.msra.mxu0 %v964
    %1055 = vmatprep.subr.mxu0 0.0
    %1056 = vmatpush1.msra.mxu0 %v965
    %1057 = vmatprep.subr.mxu0 0.0
    %1058 = vmatpush1.msra.mxu0 %v966
    %1059 = vmatprep.subr.mxu0 0.0
    %1060 = vmatpush1.msra.mxu0 %v967
    %1061 = vmatprep.subr.mxu0 0.0
    %1062 = vmatpush1.msra.mxu0 %v968
    %1063 = vmatprep.subr.mxu0 0.0
    %1064 = vmatpush1.msra.mxu0 %v969
    %1065 = vmatprep.subr.mxu0 0.0
    %1066 = vmatpush1.msra.mxu0 %v970
    %1067 = vmatprep.subr.mxu0 0.0
    %1068 = vmatpush1.msra.mxu0 %v971
    %1069 = vmatprep.subr.mxu0 0.0
    %1070 = vmatpush1.msra.mxu0 %v972
    %1071 = vmatprep.subr.mxu0 0.0
    %1072 = vmatpush1.msra.mxu0 %v973
    %1073 = vmatprep.subr.mxu0 0.0
    %1074 = vmatpush1.msra.mxu0 %v974
    %1075 = vmatprep.subr.mxu0 0.0
    %1076 = vmatpush1.msra.mxu0 %v975
    %1077 = vmatprep.subr.mxu0 0.0
    %1078 = vmatpush1.msra.mxu0 %v976
    %1079 = vmatprep.subr.mxu0 0.0
    %1080 = vmatpush1.msra.mxu0 %v977
    %1081 = vmatprep.subr.mxu0 0.0
    %1082 = vmatpush1.msra.mxu0 %v978
    %1083 = vmatprep.subr.mxu0 0.0
    %1084 = vmatpush1.msra.mxu0 %v979
    %1085 = vmatprep.subr.mxu0 0.0
    %1086 = vmatpush1.msra.mxu0 %v980
    %1087 = vmatprep.subr.mxu0 0.0
    %1088 = vmatpush1.msra.mxu0 %v981
    %1089 = vmatprep.subr.mxu0 0.0
    %1090 = vmatpush1.msra.mxu0 %v982
    %1091 = vmatprep.subr.mxu0 0.0
    %1092 = vmatpush1.msra.mxu0 %v983
    %1093 = vmatprep.subr.mxu0 0.0
    %1094 = vmatpush1.msra.mxu0 %v984
    %1095 = vmatprep.subr.mxu0 0.0
    %1096 = vmatpush1.msra.mxu0 %v985
    %1097 = vmatprep.subr.mxu0 0.0
    %1098 = vmatpush1.msra.mxu0 %v986
    %1099 = vmatprep.subr.mxu0 0.0
    %1100 = vmatpush1.msra.mxu0 %v987
    %1101 = vmatprep.mubr.f32.mxu0 %v1030
    %1102 = vmatmul.mubr.f32.gmra.mrb[0].mxu0 %v1029
    %v1103 = vpop.f32.mrb[0].mxu0
    %v1104 = vadd.f32 0.0, %v1103
    %v1105 = vpop.f32.mrb[0].mxu0
    %1106 = vdwg.mxu0
    %1107 = vmatprep.subr.mxu0 0.0
    %1108 = vmatpush1.msra.mxu0 %v988
    %1109 = vmatprep.subr.mxu0 0.0
    %1110 = vmatpush1.msra.mxu0 %v989
    %1111 = vmatprep.subr.mxu0 0.0
    %1112 = vmatpush1.msra.mxu0 %v990
    %1113 = vmatprep.subr.mxu0 0.0
    %1114 = vmatpush1.msra.mxu0 %v991
    %1115 = vmatprep.subr.mxu0 0.0
    %1116 = vmatpush1.msra.mxu0 %v992
    %1117 = vmatprep.subr.mxu0 0.0
    %1118 = vmatpush1.msra.mxu0 %v993
    %1119 = vmatprep.subr.mxu0 0.0
    %1120 = vmatpush1.msra.mxu0 %v994
    %1121 = vmatprep.subr.mxu0 0.0
    %1122 = vmatpush1.msra.mxu0 %v995
    %1123 = vmatprep.subr.mxu0 0.0
    %1124 = vmatpush1.msra.mxu0 %v996
    %1125 = vmatprep.subr.mxu0 0.0
    %1126 = vmatpush1.msra.mxu0 %v997
    %1127 = vmatprep.subr.mxu0 0.0
    %1128 = vmatpush1.msra.mxu0 %v998
    %1129 = vmatprep.subr.mxu0 0.0
    %1130 = vmatpush1.msra.mxu0 %v999
    %1131 = vmatprep.subr.mxu0 0.0
    %1132 = vmatpush1.msra.mxu0 %v1000
    %1133 = vmatprep.subr.mxu0 0.0
    %1134 = vmatpush1.msra.mxu0 %v1001
    %1135 = vmatprep.subr.mxu0 0.0
    %1136 = vmatpush1.msra.mxu0 %v1002
    %1137 = vmatprep.subr.mxu0 0.0
    %1138 = vmatpush1.msra.mxu0 %v1003
    %1139 = vmatprep.subr.mxu0 0.0
    %1140 = vmatpush1.msra.mxu0 %v1004
    %1141 = vmatprep.subr.mxu0 0.0
    %1142 = vmatpush1.msra.mxu0 %v1005
    %1143 = vmatprep.subr.mxu0 0.0
    %1144 = vmatpush1.msra.mxu0 %v1006
    %1145 = vmatprep.subr.mxu0 0.0
    %1146 = vmatpush1.msra.mxu0 %v1007
    %1147 = vmatprep.subr.mxu0 0.0
    %1148 = vmatpush1.msra.mxu0 %v1008
    %1149 = vmatprep.subr.mxu0 0.0
    %1150 = vmatpush1.msra.mxu0 %v1009
    %1151 = vmatprep.subr.mxu0 0.0
    %1152 = vmatpush1.msra.mxu0 %v1010
    %1153 = vmatprep.subr.mxu0 0.0
    %1154 = vmatpush1.msra.mxu0 %v1011
    %1155 = vmatprep.subr.mxu0 0.0
    %1156 = vmatpush1.msra.mxu0 %v1012
    %1157 = vmatprep.subr.mxu0 0.0
    %1158 = vmatpush1.msra.mxu0 %v1013
    %1159 = vmatprep.subr.mxu0 0.0
    %1160 = vmatpush1.msra.mxu0 %v1014
    %1161 = vmatprep.subr.mxu0 0.0
    %1162 = vmatpush1.msra.mxu0 %v1015
    %1163 = vmatprep.subr.mxu0 0.0
    %1164 = vmatpush1.msra.mxu0 %v1016
    %1165 = vmatprep.subr.mxu0 0.0
    %1166 = vmatpush1.msra.mxu0 %v1017
    %1167 = vmatprep.subr.mxu0 0.0
    %1168 = vmatpush1.msra.mxu0 %v1018
    %1169 = vmatprep.subr.mxu0 0.0
    %1170 = vmatpush1.msra.mxu0 %v1019
    %1171 = vmatprep.mubr.f32.mxu0 %v1032
    %1172 = vmatmul.mubr.f32.gmra.mrb[0].mxu0 %v1031
    %v1173 = vpop.f32.mrb[0].mxu0
    %v1174 = vadd.f32 %v1104, %v1173
    %v1175 = vpop.f32.mrb[0].mxu0
    %1176 = vdwg.mxu0
    %1177 = vst [vmem:[#allocation2] sm:$0x3] %v1174
    %v1178 = vpack.c.bf16 %v1174, %v1174
    %v1179 = vld [vmem:[%s4] sm:$0xf]
    %v1180 = vld [vmem:[%s4 + $0x4] sm:$0xf]
    %v1181 = vld [vmem:[%s4 + $0x8] sm:$0xf]
    %v1182 = vld [vmem:[%s4 + $0xc] sm:$0xf]
    %v1183 = vld [vmem:[%s4 + $0x10] sm:$0xf]
    %v1184 = vld [vmem:[%s4 + $0x14] sm:$0xf]
    %v1185 = vld [vmem:[%s4 + $0x18] sm:$0xf]
    %v1186 = vld [vmem:[%s4 + $0x1c] sm:$0xf]
    %v1187 = vld [vmem:[%s4 + $0x20] sm:$0xf]
    %v1188 = vld [vmem:[%s4 + $0x24] sm:$0xf]
    %v1189 = vld [vmem:[%s4 + $0x28] sm:$0xf]
    %v1190 = vld [vmem:[%s4 + $0x2c] sm:$0xf]
    %v1191 = vld [vmem:[%s4 + $0x30] sm:$0xf]
    %v1192 = vld [vmem:[%s4 + $0x34] sm:$0xf]
    %v1193 = vld [vmem:[%s4 + $0x38] sm:$0xf]
    %v1194 = vld [vmem:[%s4 + $0x3c] sm:$0xf]
    %v1195 = vld [vmem:[%s5] sm:$0x1]
    %v1197 = vlaneseq
    %v1198 = vshrl.u32 %v1197, 7
    %v1199 = vsub.s32 0, %v1198
    %v1200 = vrot.slane %v1195, %v1199
    %v1218 = vunpack.c.l.b16 %v1179
    %v1219 = vunpack.c.l.b16 %v1180
    %v1220 = vunpack.c.l.b16 %v1181
    %v1221 = vunpack.c.l.b16 %v1182
    %v1222 = vunpack.c.l.b16 %v1183
    %v1223 = vunpack.c.l.b16 %v1184
    %v1224 = vunpack.c.l.b16 %v1185
    %v1225 = vunpack.c.l.b16 %v1186
    %v1226 = vunpack.c.l.b16 %v1187
    %v1227 = vunpack.c.l.b16 %v1188
    %v1228 = vunpack.c.l.b16 %v1189
    %v1229 = vunpack.c.l.b16 %v1190
    %v1230 = vunpack.c.l.b16 %v1191
    %v1231 = vunpack.c.l.b16 %v1192
    %v1232 = vunpack.c.l.b16 %v1193
    %v1233 = vunpack.c.l.b16 %v1194
    %v1234 = vpack.c.b16 %v1219, %v1218
    %v1235 = vpack.c.b16 %v1221, %v1220
    %v1236 = vpack.c.b16 %v1223, %v1222
    %v1237 = vpack.c.b16 %v1225, %v1224
    %v1238 = vpack.c.b16 %v1227, %v1226
    %v1239 = vpack.c.b16 %v1229, %v1228
    %v1240 = vpack.c.b16 %v1231, %v1230
    %v1241 = vpack.c.b16 %v1233, %v1232
    %1250 = vmatprep.subr.bf16.mxu0 0
    %1251 = vmatpush1.bf16.msra.mxu0 %v1234
    %1252 = vmatprep.subr.bf16.mxu0 0
    %1253 = vmatpush1.bf16.msra.mxu0 %v1235
    %1254 = vmatprep.subr.bf16.mxu0 0
    %1255 = vmatpush1.bf16.msra.mxu0 %v1236
    %1256 = vmatprep.subr.bf16.mxu0 0
    %1257 = vmatpush1.bf16.msra.mxu0 %v1237
    %1258 = vmatprep.subr.bf16.mxu0 0
    %1259 = vmatpush1.bf16.msra.mxu0 %v1238
    %1260 = vmatprep.subr.bf16.mxu0 0
    %1261 = vmatpush1.bf16.msra.mxu0 %v1239
    %1262 = vmatprep.subr.bf16.mxu0 0
    %1263 = vmatpush1.bf16.msra.mxu0 %v1240
    %1264 = vmatprep.subr.bf16.mxu0 0
    %1265 = vmatpush1.bf16.msra.mxu0 %v1241
    %1266 = vmatprep.subr.bf16.mxu0 0
    %1267 = vmatpush1.bf16.msra.mxu0 0
    %1268 = vmatprep.subr.bf16.mxu0 0
    %1269 = vmatpush1.bf16.msra.mxu0 0
    %1270 = vmatprep.subr.bf16.mxu0 0
    %1271 = vmatpush1.bf16.msra.mxu0 0
    %1272 = vmatprep.subr.bf16.mxu0 0
    %1273 = vmatpush1.bf16.msra.mxu0 0
    %1274 = vmatprep.subr.bf16.mxu0 0
    %1275 = vmatpush1.bf16.msra.mxu0 0
    %1276 = vmatprep.subr.bf16.mxu0 0
    %1277 = vmatpush1.bf16.msra.mxu0 0
    %1278 = vmatprep.subr.bf16.mxu0 0
    %1279 = vmatpush1.bf16.msra.mxu0 0
    %1280 = vmatprep.subr.bf16.mxu0 0
    %1281 = vmatpush1.bf16.msra.mxu0 0
    %1282 = vmatprep.mubr.bf16.mxu0 0
    %1283 = vmatmul.mubr.bf16.gmra.mrb[0].mxu0 %v1178
    %v1284 = vpop.f32.mrb[0].mxu0
    %v1285 = vadd.f32 %v1200, %v1284
    %v1286 = vpop.f32.mrb[0].mxu0
    %v1287 = vpop.f32.mrb[0].mxu0
    %v1288 = vpop.f32.mrb[0].mxu0
    %1289 = vdwg.mxu0
    %1290 = vst [vmem:[#allocation4] sm:$0x3] %v1285
    // Predicated region
    $region26: #{timm_pallas.1} parent=1 // pred_check
      _
    $region27: #{timm_pallas.1} parent=1 // pred_check_branch
      %1292 = sbr.rel (0) target = $region29
    $region28: #{timm_pallas.1} parent=1 // pred_region
      %s1294 = ssub.s32 32, 32
      %1295 = vsyncadd [#allocation3], %s1294
      %s1297 = sshll.u32 [#allocation2], 4
      %s1298 = int_to_ptr.vmem [resolvable:$true] %s1297
      %1300 = dma.vmem_to_hbm [thread:$0]  %s1298, 32, %s6, [#allocation3]
    $region29: #{timm_pallas.1} parent=1 // pred_fallthru
      _
    // Predicated region
    $region30: #{timm_pallas.1} parent=1 // pred_check
      _
    $region31: #{timm_pallas.1} parent=1 // pred_check_branch
      %1302 = sbr.rel (0) target = $region33
    $region32: #{timm_pallas.1} parent=1 // pred_region
      %s1304 = ssub.s32 32, 32
      %1305 = vsyncadd [#allocation5], %s1304
      %s1307 = sshll.u32 [#allocation4], 4
      %s1308 = int_to_ptr.vmem [resolvable:$true] %s1307
      %1310 = dma.vmem_to_hbm [thread:$0]  %s1308, 32, %s7, [#allocation5]
    $region33: #{timm_pallas.1} parent=1 // pred_fallthru
      _
    // Predicated region
    $region34: #{timm_pallas.1} parent=1 // pred_check
      _
    $region35: #{timm_pallas.1} parent=1 // pred_check_branch
      %1312 = sbr.rel (0) target = $region37
    $region36: #{timm_pallas.1} parent=1 // pred_region
      %1313 = dma.done [#allocation3], 32
    $region37: #{timm_pallas.1} parent=1 // pred_fallthru
      _
    // Predicated region
    $region38: #{timm_pallas.1} parent=1 // pred_check
      _
    $region39: #{timm_pallas.1} parent=1 // pred_check_branch
      %1315 = sbr.rel (0) target = $region41
    $region40: #{timm_pallas.1} parent=1 // pred_region
      %1316 = dma.done [#allocation5], 32
    $region41: #{timm_pallas.1} parent=1 // pred_fallthru
      _
    %1317 = vsyncpa [#allocation3], 1
    %1318 = vsyncpa [#allocation5], 1

</llo_original>
